<compile_context>
chip_gen: v7x
topology: tpu7x:2x2x1
jax: 0.10.0
libtpu: 0.0.40
codegen_flags: <defaults>
</compile_context>

<pallas_src>
import jax
import jax.numpy as jnp
import numpy as np
from jax import lax
from jax.experimental import pallas as pl
from jax.experimental.pallas import tpu as pltpu

IN_FEATURES = 3
OUT_FEATURES = 3
# Row-tile ceiling for large inputs: multiple of 24 = lcm(sublane 8, y-period 3),
# so one (tm, 3) additive tile is valid for every grid step.
TM_MAX = 3072


def _ceil_to(x, m):
    return (x + m - 1) // m * m


def linear_plus_const_kernel(x_ref, wt_ref, add_ref, o_ref):
    """out = x @ W^T + (bias + y[row % 3]), as 3 f32 FMAs on the VPU.

    Shapes: x (tm, 3), wt (3, 3) [= W^T], add (tm, 3), out (tm, 3).
    K = N = 3, so the MXU buys nothing; VPU FMAs keep full f32 precision and
    let every tile stay 3 lanes wide (minimal HBM bytes).
    """
    x = x_ref[...]
    wt = wt_ref[...]
    acc = add_ref[...]
    for k in range(IN_FEATURES):
        acc = acc + x[:, k:k + 1] * wt[k:k + 1, :]
    o_ref[...] = acc.astype(o_ref.dtype)


def model_forward(x, params):
    """ScalarCloneTestModel.forward: self.linear(x) + y (y broadcast over last 2 dims)."""
    assert x.shape[-1] == IN_FEATURES and x.shape[-2] == 3, x.shape
    lead_shape = x.shape[:-1]
    R = int(np.prod(lead_shape))          # multiple of 3 because x.shape[-2] == 3
    x_flat = x.reshape(R, IN_FEATURES)

    # y constant from the forward pass (row values 0 / 2 / 3), folded with the bias.
    y_row = jnp.array([0.0, 2.0, 3.0], dtype=jnp.float32)
    combined = params["b"][None, :] + y_row[:, None]     # (3, OUT_FEATURES)
    wt = params["w"].T                                    # (IN, OUT): out = x @ wt

    if R <= TM_MAX:
        # Benchmark shape (R = 9): single full-extent block, no padding, no slice.
        tm, Rp = R, R
    else:
        tm = TM_MAX
        Rp = _ceil_to(R, tm)
        x_flat = jnp.pad(x_flat, ((0, Rp - R), (0, 0)))

    # One (tm, 3) additive tile reused (VMEM-resident) by every grid step; tm % 3 == 0.
    add_tile = jnp.tile(combined, (tm // 3, 1))

    out = pl.pallas_call(
        linear_plus_const_kernel,
        out_shape=jax.ShapeDtypeStruct((Rp, OUT_FEATURES), jnp.float32),
        grid=(Rp // tm,),
        in_specs=[
            pl.BlockSpec((tm, IN_FEATURES), lambda i: (i, 0)),
            pl.BlockSpec((IN_FEATURES, OUT_FEATURES), lambda i: (0, 0)),
            pl.BlockSpec((tm, OUT_FEATURES), lambda i: (0, 0)),
        ],
        out_specs=pl.BlockSpec((tm, OUT_FEATURES), lambda i: (i, 0)),
        compiler_params=pltpu.CompilerParams(dimension_semantics=("parallel",)),
    )(x_flat, wt, add_tile)

    if Rp != R:
        out = out[:R]
    return out.reshape(*lead_shape, OUT_FEATURES)


def init_params(key):
    kw, kb = jax.random.split(key)
    # mimic nn.Linear(3, 3): weight (out, in), bias (out,)
    bound = 1.0 / np.sqrt(IN_FEATURES)
    w = jax.random.uniform(kw, (OUT_FEATURES, IN_FEATURES), jnp.float32, -bound, bound)
    b = jax.random.uniform(kb, (OUT_FEATURES,), jnp.float32, -bound, bound)
    return {"w": w, "b": b}


def reference_forward(x, params):
    """Pure-JAX/XLA reference mirroring the PyTorch forward."""
    y = jnp.zeros((3, 3), jnp.float32).at[1, :].set(2.0).at[2, :].set(3.0)
    out = jnp.einsum("...i,oi->...o", x, params["w"],
                     precision=lax.Precision.HIGHEST) + params["b"]
    return out + y


if __name__ == "__main__":
    key = jax.random.PRNGKey(0)
    pkey, xkey = jax.random.split(key)
    params = init_params(pkey)

    # INPUT_SIZE = (1, 3, 3, 3)
    x = jax.random.normal(xkey, (1, 3, 3, 3), jnp.float32)

    out = jax.jit(model_forward)(x, params)
    out = jax.block_until_ready(out)
    assert out.shape == (1, 3, 3, 3), out.shape

    ref = reference_forward(x, params)
    np.testing.assert_allclose(np.asarray(out), np.asarray(ref), rtol=1e-4, atol=1e-4)
    print("KERNEL_OK")
</pallas_src>

<mosaic_0001>
module attributes {stable_mosaic.version = 11 : i64} {
  func.func @linear_plus_const_kernel(%arg0: i32, %arg1: memref<9x3xf32, #tpu.memory_space<vmem>>, %arg2: memref<3x3xf32, #tpu.memory_space<vmem>>, %arg3: memref<9x3xf32, #tpu.memory_space<vmem>>, %arg4: memref<9x3xf32, #tpu.memory_space<vmem>>) attributes {dimension_semantics = [#tpu.dimension_semantics<parallel>], iteration_bounds = array<i64: 1>, scalar_prefetch = 0 : i64, scratch_operands = 0 : i64, tpu.core_type = #tpu.core_type<tc>, window_params = [{transform_indices = @transform_0, window_bounds = array<i64: 9, 3>}, {pipeline_mode = #tpu.pipeline_mode<synchronous>, transform_indices = @transform_1, window_bounds = array<i64: 3, 3>}, {pipeline_mode = #tpu.pipeline_mode<synchronous>, transform_indices = @transform_2, window_bounds = array<i64: 9, 3>}, {transform_indices = @transform_3, window_bounds = array<i64: 9, 3>}]} {
    %c0 = arith.constant 0 : index
    %c0_0 = arith.constant 0 : index
    %0 = vector.load %arg1[%c0, %c0_0] : memref<9x3xf32, #tpu.memory_space<vmem>>, vector<9x3xf32>
    %c0_1 = arith.constant 0 : index
    %c0_2 = arith.constant 0 : index
    %1 = vector.load %arg2[%c0_1, %c0_2] : memref<3x3xf32, #tpu.memory_space<vmem>>, vector<3x3xf32>
    %c0_3 = arith.constant 0 : index
    %c0_4 = arith.constant 0 : index
    %2 = vector.load %arg3[%c0_3, %c0_4] : memref<9x3xf32, #tpu.memory_space<vmem>>, vector<9x3xf32>
    %3 = vector.extract_strided_slice %0 {offsets = [0, 0], sizes = [9, 1], strides = [1, 1]} : vector<9x3xf32> to vector<9x1xf32>
    %4 = vector.extract_strided_slice %1 {offsets = [0, 0], sizes = [1, 3], strides = [1, 1]} : vector<3x3xf32> to vector<1x3xf32>
    %5 = vector.broadcast %3 : vector<9x1xf32> to vector<9x3xf32>
    %6 = vector.broadcast %4 : vector<1x3xf32> to vector<9x3xf32>
    %7 = arith.mulf %5, %6 : vector<9x3xf32>
    %8 = arith.addf %2, %7 : vector<9x3xf32>
    %9 = vector.extract_strided_slice %0 {offsets = [0, 1], sizes = [9, 1], strides = [1, 1]} : vector<9x3xf32> to vector<9x1xf32>
    %10 = vector.extract_strided_slice %1 {offsets = [1, 0], sizes = [1, 3], strides = [1, 1]} : vector<3x3xf32> to vector<1x3xf32>
    %11 = vector.broadcast %9 : vector<9x1xf32> to vector<9x3xf32>
    %12 = vector.broadcast %10 : vector<1x3xf32> to vector<9x3xf32>
    %13 = arith.mulf %11, %12 : vector<9x3xf32>
    %14 = arith.addf %8, %13 : vector<9x3xf32>
    %15 = vector.extract_strided_slice %0 {offsets = [0, 2], sizes = [9, 1], strides = [1, 1]} : vector<9x3xf32> to vector<9x1xf32>
    %16 = vector.extract_strided_slice %1 {offsets = [2, 0], sizes = [1, 3], strides = [1, 1]} : vector<3x3xf32> to vector<1x3xf32>
    %17 = vector.broadcast %15 : vector<9x1xf32> to vector<9x3xf32>
    %18 = vector.broadcast %16 : vector<1x3xf32> to vector<9x3xf32>
    %19 = arith.mulf %17, %18 : vector<9x3xf32>
    %20 = arith.addf %14, %19 : vector<9x3xf32>
    %c0_5 = arith.constant 0 : index
    %c0_6 = arith.constant 0 : index
    %21 = vector.load %arg4[%c0_5, %c0_6] : memref<9x3xf32, #tpu.memory_space<vmem>>, vector<9x3xf32>
    tpu.vector_store %arg4[%c0_5, %c0_6], %20 {strides = array<i32>} : memref<9x3xf32, #tpu.memory_space<vmem>>, vector<9x3xf32>,
    return
  }
  func.func @transform_0(%arg0: i32) -> (i32, i32) {
    %c0_i32 = arith.constant 0 : i32
    %c0_i32_0 = arith.constant 0 : i32
    return %arg0, %c0_i32 : i32, i32
  }
  func.func @transform_1(%arg0: i32) -> (i32, i32) {
    %c0_i32 = arith.constant 0 : i32
    %c0_i32_0 = arith.constant 0 : i32
    %c0_i32_1 = arith.constant 0 : i32
    return %c0_i32, %c0_i32_0 : i32, i32
  }
  func.func @transform_2(%arg0: i32) -> (i32, i32) {
    %c0_i32 = arith.constant 0 : i32
    %c0_i32_0 = arith.constant 0 : i32
    %c0_i32_1 = arith.constant 0 : i32
    return %c0_i32, %c0_i32_0 : i32, i32
  }
  func.func @transform_3(%arg0: i32) -> (i32, i32) {
    %c0_i32 = arith.constant 0 : i32
    %c0_i32_0 = arith.constant 0 : i32
    return %arg0, %c0_i32 : i32, i32
  }
}

</mosaic_0001>

<llo_original>
// kernel: tile.9
$region0: #{tile.9}
  %s0 = inlined_call_operand.vmem [shape: f32[3,3,3], index: 0, kind: input, shape index: {}]
  %s1 = inlined_call_operand.vmem [shape: f32[9,3], index: 1, kind: output, shape index: {}]
  $region1: #{tile.9} parent=0
    #allocation0 [shape = 'u8[4096]{0}', space=vmem, size = 0x1000, scoped, tag = 'scoped mem for output reshape']
    #allocation1 [shape = 'u8[12288]{0}', space=vmem, size = 0x3000, scoped, tag = 'scoped mem for input reshape']
    %s3 = sshllo.u32 0, 4
    %s4 = smul.addr 4, 2
    %s5 = scalar_lea.vmem %s0, %s4
    %v6 = vld [vmem:[%s5] sm:%s3]
    %s7 = scalar_lea.vmem [#allocation1], 16
    %8 = vst [vmem:[%s7] sm:%s3] %v6
    %s9 = scalar_lea.vmem %s0, 4
    %v10 = vld [vmem:[%s9] sm:%s3]
    %s11 = scalar_lea.vmem [#allocation1], 8
    %12 = vst [vmem:[%s11] sm:%s3] %v10
    %v13 = vld [vmem:[%s0] sm:%s3]
    %14 = vst [vmem:[#allocation1] sm:%s3] %v13
    %v15 = vld [vmem:[#allocation1] ss:$8 sm:$0x7]
    %vm16 = vcmask 23552
    %17 = vst.msk [vmem:[#allocation0] sm:$0x7] %vm16, %v15
    %s18 = scalar_lea.vmem [#allocation1], 2
    %v19 = vld [vmem:[%s18] ss:$8 sm:$0x7]
    %20 = vrot.lane.b32.xlu0 %v19, 6
    %v21 = vpop.permute.xlu0 %20
    %vm22 = vcmask 72752
    %23 = vst.msk [vmem:[#allocation0] sm:$0x7] %vm22, %v21
    %s24 = scalar_lea.vmem [#allocation1], 1
    %v25 = vld [vmem:[%s24] ss:$8 sm:$0x7]
    %26 = vrot.lane.b32.xlu0 %v25, 3
    %v27 = vpop.permute.xlu0 %26
    %vm28 = vcmask 48152
    %29 = vst.msk [vmem:[#allocation0] sm:$0x7] %vm28, %v27
    %s31 = sshllo.u32 0, 4
    %v33 = vld [vmem:[#allocation0] sm:%s31]
    %s34 = sshllo.u32 0, 4
    %35 = vst [vmem:[%s1] sm:%s34] %v33

// kernel: model_forward.1
$region0: #{model_forward.1}
  #allocation0 [shape = 'u32[]', space=smem, size = 0x4, offset = 0x4, fixed_abs, tag = 'smem constant byte address 0x4 - core index']
  #allocation1 [shape = 'u32[144,128]{1,0:T(1,128)}', space=vmem, size = 0x12000, scoped, tag = 'internal scratch']
  %s0 = inlined_call_operand.vmem [shape: f32[9,3], index: 0, kind: input, shape index: {}]
  %s1 = inlined_call_operand.vmem [shape: f32[3,3], index: 1, kind: input, shape index: {}]
  %s2 = inlined_call_operand.vmem [shape: f32[9,3], index: 2, kind: input, shape index: {}]
  %s3 = inlined_call_operand.vmem [shape: f32[9,3], index: 3, kind: output, shape index: {}]
  %s4 = sld [smem:[#allocation0]]
  $region22: #{model_forward.1} parent=0
    _
  %s6 = ssub.s32 1, %s4
  %s7 = scalar_select 0, %s6, %s4
  // Predicated region
  $region2: #{model_forward.1} parent=0 // pred_check
    _
  $region3: #{model_forward.1} parent=0 // pred_check_branch
    %9 = sbr.rel (0) target = $region5
  $region4: #{model_forward.1} parent=0 // pred_region
    _
  $region5: #{model_forward.1} parent=0 // pred_fallthru
    _
  // Predicated region
  $region6: #{model_forward.1} parent=0 // pred_check
    _
  $region7: #{model_forward.1} parent=0 // pred_check_branch
    %11 = sbr.rel (0) target = $region9
  $region8: #{model_forward.1} parent=0 // pred_region
    _
  $region9: #{model_forward.1} parent=0 // pred_fallthru
    _
  // Predicated region
  $region10: #{model_forward.1} parent=0 // pred_check
    _
  $region11: #{model_forward.1} parent=0 // pred_check_branch
    %13 = sbr.rel (0) target = $region13
  $region12: #{model_forward.1} parent=0 // pred_region
    _
  $region13: #{model_forward.1} parent=0 // pred_fallthru
    _
  %v14 = vld [vmem:[%s0] sm:$0xff]
  %v15 = vld [vmem:[%s0 + $0x8] sm:$0x1]
  %v16 = vld [vmem:[%s1] sm:$0x7]
  %v17 = vld [vmem:[%s2] sm:$0xff]
  %v18 = vld [vmem:[%s2 + $0x8] sm:$0x1]
  %20 = vset.pattern.permute.xlu0 0
  %21 = vperm.xlu0 %20, %v14
  %v22 = vpop.permute.xlu0 %21
  %25 = vset.pattern.permute.xlu0 0
  %26 = vperm.xlu0 %25, %v15
  %v27 = vpop.permute.xlu0 %26
  %v29 = vlaneseq
  %v30 = vshrl.u32 %v29, 7
  %v31 = vsub.s32 0, %v30
  %v32 = vrot.slane %v16, %v31
  %v33 = vmul.f32 %v22, %v32
  %v34 = vmul.f32 %v27, %v32
  %v35 = vadd.f32 %v17, %v33
  %v36 = vadd.f32 %v18, %v34
  %37 = vset.pattern.permute.xlu0 1
  %38 = vperm.xlu0 %37, %v14
  %v39 = vpop.permute.xlu0 %38
  %41 = vset.pattern.permute.xlu0 1
  %42 = vperm.xlu0 %41, %v15
  %v43 = vpop.permute.xlu0 %42
  %v45 = vlaneseq
  %v46 = vshrl.u32 %v45, 7
  %v47 = vsub.s32 1, %v46
  %v48 = vrot.slane %v16, %v47
  %v49 = vmul.f32 %v39, %v48
  %v50 = vmul.f32 %v43, %v48
  %v51 = vadd.f32 %v35, %v49
  %v52 = vadd.f32 %v36, %v50
  %53 = vset.pattern.permute.xlu0 2
  %54 = vperm.xlu0 %53, %v14
  %v55 = vpop.permute.xlu0 %54
  %57 = vset.pattern.permute.xlu0 2
  %58 = vperm.xlu0 %57, %v15
  %v59 = vpop.permute.xlu0 %58
  %v61 = vlaneseq
  %v62 = vshrl.u32 %v61, 7
  %v63 = vsub.s32 2, %v62
  %v64 = vrot.slane %v16, %v63
  %v65 = vmul.f32 %v55, %v64
  %v66 = vmul.f32 %v59, %v64
  %v67 = vadd.f32 %v51, %v65
  %v68 = vadd.f32 %v52, %v66
  %vm69 = vcmask 23552
  %70 = vst.msk [vmem:[%s3] sm:$0xff] %vm69, %v67
  %vm71 = vcmask 16384
  %72 = vst.msk [vmem:[%s3 + $0x8] sm:$0x1] %vm71, %v68
  // Predicated region
  $region14: #{model_forward.1} parent=0 // pred_check
    _
  $region15: #{model_forward.1} parent=0 // pred_check_branch
    %74 = sbr.rel (0) target = $region17
  $region16: #{model_forward.1} parent=0 // pred_region
    _
  $region17: #{model_forward.1} parent=0 // pred_fallthru
    _
  // Predicated region
  $region18: #{model_forward.1} parent=0 // pred_check
    _
  $region19: #{model_forward.1} parent=0 // pred_check_branch
    %76 = sbr.rel (0) target = $region21
  $region20: #{model_forward.1} parent=0 // pred_region
    _
  $region21: #{model_forward.1} parent=0 // pred_fallthru
    _

</llo_original>
